<compile_context>
chip_gen: v5e
topology: v5e:2x2
jax: 0.10.0
libtpu: 0.0.40
codegen_flags: <defaults>
</compile_context>

<pallas_src>
import math
import jax
import jax.numpy as jnp
from jax.experimental import pallas as pl
from jax.experimental.pallas import tpu as pltpu

F32 = jnp.float32
BF16 = jnp.bfloat16
TILE_ROWS = 512          # row-block size (sized conservatively for v7x's 64 MiB VMEM)


def _relu(v):
    return jnp.maximum(v, 0.0)


def _mm(x, w):
    # MXU matmul: bf16 inputs, f32 accumulation.
    return jnp.dot(x.astype(BF16), w.astype(BF16), preferred_element_type=jnp.float32)


def _round_up(x, m):
    return ((x + m - 1) // m) * m


# ----------------------------------------------------------------------------
# Row-gridded pallas_call helper
#   row_args   : 2D arrays tiled along rows (block = (tile, feat))
#   const_args : 2D weights / biases, VMEM-resident with constant index_map
# ----------------------------------------------------------------------------
def _row_pallas_call(kernel, row_args, const_args, out_feats, n_rows, n_outputs=1):
    tile = min(TILE_ROWS, n_rows)
    grid = (pl.cdiv(n_rows, tile),)
    in_specs = (
        [pl.BlockSpec((tile, a.shape[1]), lambda i: (i, 0)) for a in row_args]
        + [pl.BlockSpec(a.shape, lambda i: (0, 0)) for a in const_args]
    )
    if n_outputs == 1:
        out_specs = pl.BlockSpec((tile, out_feats), lambda i: (i, 0))
        out_shape = jax.ShapeDtypeStruct((n_rows, out_feats), F32)
    else:
        out_specs = tuple(pl.BlockSpec((tile, f), lambda i: (i, 0)) for f in out_feats)
        out_shape = tuple(jax.ShapeDtypeStruct((n_rows, f), F32) for f in out_feats)
    return pl.pallas_call(
        kernel,
        grid=grid,
        in_specs=in_specs,
        out_specs=out_specs,
        out_shape=out_shape,
        compiler_params=pltpu.CompilerParams(dimension_semantics=("parallel",)),
    )(*row_args, *const_args)


# ----------------------------------------------------------------------------
# Kernel 1: fused W_i1 + EmbeddingBlock (per edge)
#   message = relu(W_i1(cat(atom_feat[j], edge_feat)))
#   rbf_msg = relu(cat([x[i], x[j], relu(lin_rbf(rbf0))]) @ W + b)   (split matmuls)
# ----------------------------------------------------------------------------
def init_embed_kernel(bonds_ref, xi_ref, xj_ref, rbf0_ref,
                      w_i1, b_i1, w_rbf, b_rbf, w1, w2, w3, b_emb,
                      msg_ref, rbfmsg_ref):
    msg_ref[...] = _relu(_mm(bonds_ref[...], w_i1[...]) + b_i1[...])
    rbf_h = _relu(_mm(rbf0_ref[...], w_rbf[...]) + b_rbf[...])
    pre = (_mm(xi_ref[...], w1[...])
           + _mm(xj_ref[...], w2[...])
           + _mm(rbf_h, w3[...])
           + b_emb[...])
    rbfmsg_ref[...] = _relu(pre)


# ----------------------------------------------------------------------------
# Kernel 2: InteractionBlock edge-level front half (per edge)
#   down = relu(down_proj(relu(lin_kj(x)) * relu(lin_rbf2(rbf))))
# ----------------------------------------------------------------------------
def edge_down_kernel(x_ref, rbf_ref, w_kj, b_kj, w_rbf2, b_rbf2, w_down, b_down, o_ref):
    x_kj = _relu(_mm(x_ref[...], w_kj[...]) + b_kj[...])
    rbf_h = _relu(_mm(rbf_ref[...], w_rbf2[...]) + b_rbf2[...])
    h = x_kj * rbf_h
    o_ref[...] = _relu(_mm(h, w_down[...]) + b_down[...])


# ----------------------------------------------------------------------------
# Kernel 3: InteractionBlock triplet-level part (per triplet)
#   up = relu(up_proj(gathered * relu(lin_sbf2(relu(lin_sbf1(sbf))))))
# ----------------------------------------------------------------------------
def triplet_up_kernel(g_ref, sbf_ref, w_sbf1, w_sbf2, w_up, b_up, o_ref):
    s = _relu(_mm(sbf_ref[...], w_sbf1[...]))      # lin_sbf1 (no bias)
    s = _relu(_mm(s, w_sbf2[...]))                 # lin_sbf2 (no bias)
    h = g_ref[...] * s
    o_ref[...] = _relu(_mm(h, w_up[...]) + b_up[...])


# ----------------------------------------------------------------------------
# Kernel 4: ResidualLayer (num_before_skip = 1) + skip connection (per edge)
# ----------------------------------------------------------------------------
def edge_res_skip_kernel(agg_ref, x_ref, w_r1, b_r1, w_r2, b_r2, o_ref):
    agg = agg_ref[...]
    h = _relu(_mm(agg, w_r1[...]) + b_r1[...])
    h = _relu(_mm(h, w_r2[...]) + b_r2[...])
    o_ref[...] = (agg + h) + x_ref[...]


# ----------------------------------------------------------------------------
# Kernel 5: readout  relu(W_o(cat(atom_feature, atom_message)))  (per atom)
# ----------------------------------------------------------------------------
def readout_kernel(af_ref, am_ref, w_o_a, w_o_m, b_o, o_ref):
    pre = _mm(af_ref[...], w_o_a[...]) + _mm(am_ref[...], w_o_m[...]) + b_o[...]
    o_ref[...] = _relu(pre)


# ----------------------------------------------------------------------------
# Basis functions (glue, plain JAX, elementwise)
# ----------------------------------------------------------------------------
def _envelope(x, exponent=5):
    p = exponent + 1
    a = -(p + 1) * (p + 2) / 2.0
    b = p * (p + 2)
    c = -p * (p + 1) / 2.0
    return 1.0 / x + a * x ** (p - 1) + b * x ** p + c * x ** (p + 1)


def bessel_basis(dist, num_radial, cutoff):
    d = dist[:, None] / cutoff
    freq = jnp.pi * jnp.arange(1, num_radial + 1, dtype=F32)
    return _envelope(d) * jnp.sin(freq * d)


# TODO(synk): torch_geometric's SphericalBasisLayer uses sympy-generated spherical
# Bessel functions and real spherical harmonics; here a deterministic sin/cos
# surrogate with the exact same output shape (T, num_spherical * num_radial) is used.
def spherical_basis(dist, angle, idx_kj, num_spherical, num_radial, cutoff):
    d = dist / cutoff
    k = jnp.arange(1, num_radial + 1, dtype=F32)
    rbf = _envelope(d)[:, None] * jnp.sin(k * jnp.pi * d[:, None])   # (E, R)
    rbf = rbf[idx_kj]                                                # (T, R)
    l = jnp.arange(num_spherical, dtype=F32)
    cbf = jnp.cos(l * angle[:, None])                                # (T, S)
    T = idx_kj.shape[0]
    return (cbf[:, :, None] * rbf[:, None, :]).reshape(T, num_spherical * num_radial)


# ----------------------------------------------------------------------------
# Parameter init (deterministic) — weights (in, out) in bf16, biases f32
# ----------------------------------------------------------------------------
def init_params(key, H, NBIL, S, R, radius, atom_feat_dim=133, bond_feat_dim=14):
    keys = iter(jax.random.split(key, 256))

    def lin(in_dim, out_dim, pad_in_to=None):
        w = (jax.random.normal(next(keys), (in_dim, out_dim), dtype=F32)
             * (1.0 / math.sqrt(in_dim)))
        if pad_in_to is not None and pad_in_to > in_dim:
            w = jnp.pad(w, ((0, pad_in_to - in_dim), (0, 0)))   # zero rows: no effect
        return w.astype(BF16)

    def bias(out_dim):
        return jnp.zeros((1, out_dim), dtype=F32)

    SR_pad = _round_up(S * R, 128)   # lane-pad the sbf feature dim
    params = {
        'emb_table': jax.random.normal(next(keys), (100, H), dtype=F32) * 0.1,
        'w_i1': lin(atom_feat_dim + bond_feat_dim, H), 'b_i1': bias(H),
        'emb_block': {
            'w_rbf': lin(R, H), 'b_rbf': bias(H),
            'w1': lin(H, H), 'w2': lin(H, H), 'w3': lin(H, H), 'b': bias(H),
        },
        'interaction': [
            {
                'w_kj': lin(H, H), 'b_kj': bias(H),
                'w_rbf2': lin(H, H), 'b_rbf2': bias(H),
                'w_sbf1': lin(S * R, NBIL, pad_in_to=SR_pad),
                'w_sbf2': lin(NBIL, NBIL),
                'w_down': lin(H, NBIL), 'b_down': bias(NBIL),
                'w_up': lin(NBIL, H), 'b_up': bias(H),
                'w_r1': lin(H, H), 'b_r1': bias(H),
                'w_r2': lin(H, H), 'b_r2': bias(H),
            } for _ in range(radius)
        ],
        'w_o_a': lin(atom_feat_dim, H), 'w_o_m': lin(H, H), 'b_o': bias(H),
    }
    return params


# ----------------------------------------------------------------------------
# DimeNet forward
# ----------------------------------------------------------------------------
def dimenet_forward(params, atom_feature, edge_feature, dist, angle,
                    i_idx, j_idx, idx_kj,
                    incomebond_edge_ids, incomebond_index_to_atom,
                    hidden_dim, num_spherical, num_radial, cutoff=8.0):
    N = atom_feature.shape[0]
    E = edge_feature.shape[0]
    T = idx_kj.shape[0]
    H = hidden_dim

    # atom types from the one-hot block of atom_feature
    atom_type = jnp.argmax(atom_feature[:, :100], axis=1)
    x_emb = params['emb_table'][atom_type]

    # initial_bonds = cat(atom_feature[j], edge_feature)
    initial_bonds = jnp.concatenate([atom_feature[j_idx], edge_feature], axis=1)

    # basis functions
    rbf0 = bessel_basis(dist, num_radial, cutoff)
    sbf = spherical_basis(dist, angle, idx_kj, num_spherical, num_radial, cutoff)
    SR = num_spherical * num_radial
    SR_pad = params['interaction'][0]['w_sbf1'].shape[0]
    if SR_pad > SR:
        sbf = jnp.pad(sbf, ((0, 0), (0, SR_pad - SR)))          # lane-dense input

    # Kernel 1 (fused W_i1 + EmbeddingBlock): two (E, H) outputs
    eb = params['emb_block']
    message, rbf = _row_pallas_call(
        init_embed_kernel,
        row_args=[initial_bonds, x_emb[i_idx], x_emb[j_idx], rbf0],
        const_args=[params['w_i1'], params['b_i1'],
                    eb['w_rbf'], eb['b_rbf'], eb['w1'], eb['w2'], eb['w3'], eb['b']],
        out_feats=(H, H), n_rows=E, n_outputs=2)

    idx_kj = idx_kj.astype(jnp.int32)
    # NOTE: DimeNet.forward passes idx_kj for BOTH idx_kj and idx_ji — reproduce that.
    idx_ji = idx_kj

    for lp in params['interaction']:
        down = _row_pallas_call(
            edge_down_kernel, row_args=[message, rbf],
            const_args=[lp['w_kj'], lp['b_kj'], lp['w_rbf2'], lp['b_rbf2'],
                        lp['w_down'], lp['b_down']],
            out_feats=lp['w_down'].shape[1], n_rows=E)

        # index-driven gather x_kj[idx_kj] : O(T) work, no one-hot matmul
        gathered = jnp.take(down, idx_kj, axis=0)                       # (T, NBIL)

        up = _row_pallas_call(
            triplet_up_kernel, row_args=[gathered, sbf],
            const_args=[lp['w_sbf1'], lp['w_sbf2'], lp['w_up'], lp['b_up']],
            out_feats=H, n_rows=T)

        # TODO(synk): index_add_ (scatter-add) has no vectorized Pallas TPU
        # equivalent; done with an XLA scatter-add (O(T) work, no one-hot matmul).
        agg = jnp.zeros((E, H), F32).at[idx_ji].add(up)

        message = _row_pallas_call(
            edge_res_skip_kernel, row_args=[agg, message],
            const_args=[lp['w_r1'], lp['b_r1'], lp['w_r2'], lp['b_r2']],
            out_feats=H, n_rows=E)

    # readout: gather incoming-bond messages, scatter-add to atoms (index-driven)
    inc_hidden = jnp.take(message, incomebond_edge_ids.astype(jnp.int32), axis=0)
    atom_msg = jnp.zeros((N, H), F32).at[
        incomebond_index_to_atom.astype(jnp.int32)].add(inc_hidden)

    atom_hiddens = _row_pallas_call(
        readout_kernel, row_args=[atom_feature, atom_msg],
        const_args=[params['w_o_a'], params['w_o_m'], params['b_o']],
        out_feats=H, n_rows=N)
    return atom_hiddens


# ----------------------------------------------------------------------------
if __name__ == "__main__":
    key = jax.random.PRNGKey(0)

    # Small synthetic graph, lane-dense feature widths (H = NBIL = 128)
    N = 8            # atoms
    E = 16           # directed edges
    T = 24           # angle triplets
    NB = 16          # incoming-bond entries
    H = 128          # hidden_dim (128-lane aligned)
    NBIL = 128       # num_bilinear (== hidden_dim, required by the index_add_)
    S, R = 6, 16     # num_spherical, num_radial
    RADIUS = 2       # number of InteractionBlocks

    keys = jax.random.split(key, 16)
    atom_type = jax.random.randint(keys[0], (N,), 0, 100)
    atom_feature = jnp.concatenate(
        [jax.nn.one_hot(atom_type, 100, dtype=F32),
         jax.random.uniform(keys[1], (N, 33), dtype=F32)], axis=1)          # (N, 133)
    edge_feature = jax.random.uniform(keys[2], (E, 14), dtype=F32)           # (E, 14)
    dist = jax.random.uniform(keys[3], (E,), dtype=F32, minval=0.5, maxval=7.5)
    angle = jax.random.uniform(keys[4], (T,), dtype=F32, minval=0.0, maxval=math.pi)
    i_idx = jax.random.randint(keys[5], (E,), 0, N)
    j_idx = jax.random.randint(keys[6], (E,), 0, N)
    idx_kj = jax.random.randint(keys[7], (T,), 0, E)
    incomebond_edge_ids = jax.random.randint(keys[8], (NB,), 0, E)
    incomebond_index_to_atom = jax.random.randint(keys[9], (NB,), 0, N)

    params = init_params(keys[10], H, NBIL, S, R, RADIUS)

    out = dimenet_forward(params, atom_feature, edge_feature, dist, angle,
                          i_idx, j_idx, idx_kj,
                          incomebond_edge_ids, incomebond_index_to_atom,
                          hidden_dim=H, num_spherical=S, num_radial=R)
    out = jax.block_until_ready(out)
    assert out.shape == (N, H) and out.dtype == jnp.float32
    print("KERNEL_OK")
</pallas_src>

<mosaic_0001>
module attributes {stable_mosaic.version = 11 : i64} {
  func.func @init_embed_kernel(%arg0: i32, %arg1: memref<16x147xf32, #tpu.memory_space<vmem>>, %arg2: memref<16x128xf32, #tpu.memory_space<vmem>>, %arg3: memref<16x128xf32, #tpu.memory_space<vmem>>, %arg4: memref<16x16xf32, #tpu.memory_space<vmem>>, %arg5: memref<147x128xbf16, #tpu.memory_space<vmem>>, %arg6: memref<1x128xf32, #tpu.memory_space<vmem>>, %arg7: memref<16x128xbf16, #tpu.memory_space<vmem>>, %arg8: memref<1x128xf32, #tpu.memory_space<vmem>>, %arg9: memref<128x128xbf16, #tpu.memory_space<vmem>>, %arg10: memref<128x128xbf16, #tpu.memory_space<vmem>>, %arg11: memref<128x128xbf16, #tpu.memory_space<vmem>>, %arg12: memref<1x128xf32, #tpu.memory_space<vmem>>, %arg13: memref<16x128xf32, #tpu.memory_space<vmem>>, %arg14: memref<16x128xf32, #tpu.memory_space<vmem>>) attributes {dimension_semantics = [#tpu.dimension_semantics<parallel>], iteration_bounds = array<i64: 1>, scalar_prefetch = 0 : i64, scratch_operands = 0 : i64, tpu.core_type = #tpu.core_type<tc>, window_params = [{transform_indices = @transform_0, window_bounds = array<i64: 16, 147>}, {transform_indices = @transform_1, window_bounds = array<i64: 16, 128>}, {transform_indices = @transform_2, window_bounds = array<i64: 16, 128>}, {transform_indices = @transform_3, window_bounds = array<i64: 16, 16>}, {pipeline_mode = #tpu.pipeline_mode<synchronous>, transform_indices = @transform_4, window_bounds = array<i64: 147, 128>}, {pipeline_mode = #tpu.pipeline_mode<synchronous>, transform_indices = @transform_5, window_bounds = array<i64: 1, 128>}, {pipeline_mode = #tpu.pipeline_mode<synchronous>, transform_indices = @transform_6, window_bounds = array<i64: 16, 128>}, {pipeline_mode = #tpu.pipeline_mode<synchronous>, transform_indices = @transform_7, window_bounds = array<i64: 1, 128>}, {pipeline_mode = #tpu.pipeline_mode<synchronous>, transform_indices = @transform_8, window_bounds = array<i64: 128, 128>}, {pipeline_mode = #tpu.pipeline_mode<synchronous>, transform_indices = @transform_9, window_bounds = array<i64: 128, 128>}, {pipeline_mode = #tpu.pipeline_mode<synchronous>, transform_indices = @transform_10, window_bounds = array<i64: 128, 128>}, {pipeline_mode = #tpu.pipeline_mode<synchronous>, transform_indices = @transform_11, window_bounds = array<i64: 1, 128>}, {transform_indices = @transform_12, window_bounds = array<i64: 16, 128>}, {transform_indices = @transform_13, window_bounds = array<i64: 16, 128>}]} {
    %c0 = arith.constant 0 : index
    %c0_0 = arith.constant 0 : index
    %0 = vector.load %arg1[%c0, %c0_0] : memref<16x147xf32, #tpu.memory_space<vmem>>, vector<16x147xf32>
    %c0_1 = arith.constant 0 : index
    %c0_2 = arith.constant 0 : index
    %1 = vector.load %arg5[%c0_1, %c0_2] : memref<147x128xbf16, #tpu.memory_space<vmem>>, vector<147x128xbf16>
    %2 = arith.truncf %0 : vector<16x147xf32> to vector<16x147xbf16>
    %cst = arith.constant dense<0.000000e+00> : vector<16x128xf32>
    %3 = tpu.matmul %2, %1, %cst {dimension_numbers = #tpu.dot_dimension_numbers<[1], [0], [0], [1], [0, 0, 1, 1], [], []>} : vector<16x147xbf16>, vector<147x128xbf16>, vector<16x128xf32> -> vector<16x128xf32>
    %c0_3 = arith.constant 0 : index
    %c0_4 = arith.constant 0 : index
    %4 = vector.load %arg6[%c0_3, %c0_4] : memref<1x128xf32, #tpu.memory_space<vmem>>, vector<1x128xf32>
    %5 = vector.broadcast %4 : vector<1x128xf32> to vector<16x128xf32>
    %6 = arith.addf %3, %5 : vector<16x128xf32>
    %cst_5 = arith.constant 0.000000e+00 : f32
    %7 = vector.broadcast %cst_5 : f32 to vector<16x128xf32>
    %8 = arith.maximumf %6, %7 : vector<16x128xf32>
    %c0_6 = arith.constant 0 : index
    %c0_7 = arith.constant 0 : index
    %9 = vector.load %arg13[%c0_6, %c0_7] : memref<16x128xf32, #tpu.memory_space<vmem>>, vector<16x128xf32>
    tpu.vector_store %arg13[%c0_6, %c0_7], %8 {strides = array<i32>} : memref<16x128xf32, #tpu.memory_space<vmem>>, vector<16x128xf32>,
    %c0_8 = arith.constant 0 : index
    %c0_9 = arith.constant 0 : index
    %10 = vector.load %arg4[%c0_8, %c0_9] : memref<16x16xf32, #tpu.memory_space<vmem>>, vector<16x16xf32>
    %c0_10 = arith.constant 0 : index
    %c0_11 = arith.constant 0 : index
    %11 = vector.load %arg7[%c0_10, %c0_11] : memref<16x128xbf16, #tpu.memory_space<vmem>>, vector<16x128xbf16>
    %12 = arith.truncf %10 : vector<16x16xf32> to vector<16x16xbf16>
    %cst_12 = arith.constant dense<0.000000e+00> : vector<16x128xf32>
    %13 = tpu.matmul %12, %11, %cst_12 {dimension_numbers = #tpu.dot_dimension_numbers<[1], [0], [0], [1], [0, 0, 1, 1], [], []>} : vector<16x16xbf16>, vector<16x128xbf16>, vector<16x128xf32> -> vector<16x128xf32>
    %c0_13 = arith.constant 0 : index
    %c0_14 = arith.constant 0 : index
    %14 = vector.load %arg8[%c0_13, %c0_14] : memref<1x128xf32, #tpu.memory_space<vmem>>, vector<1x128xf32>
    %15 = vector.broadcast %14 : vector<1x128xf32> to vector<16x128xf32>
    %16 = arith.addf %13, %15 : vector<16x128xf32>
    %cst_15 = arith.constant 0.000000e+00 : f32
    %17 = vector.broadcast %cst_15 : f32 to vector<16x128xf32>
    %18 = arith.maximumf %16, %17 : vector<16x128xf32>
    %c0_16 = arith.constant 0 : index
    %c0_17 = arith.constant 0 : index
    %19 = vector.load %arg2[%c0_16, %c0_17] : memref<16x128xf32, #tpu.memory_space<vmem>>, vector<16x128xf32>
    %c0_18 = arith.constant 0 : index
    %c0_19 = arith.constant 0 : index
    %20 = vector.load %arg9[%c0_18, %c0_19] : memref<128x128xbf16, #tpu.memory_space<vmem>>, vector<128x128xbf16>
    %21 = arith.truncf %19 : vector<16x128xf32> to vector<16x128xbf16>
    %cst_20 = arith.constant dense<0.000000e+00> : vector<16x128xf32>
    %22 = tpu.matmul %21, %20, %cst_20 {dimension_numbers = #tpu.dot_dimension_numbers<[1], [0], [0], [1], [0, 0, 1, 1], [], []>} : vector<16x128xbf16>, vector<128x128xbf16>, vector<16x128xf32> -> vector<16x128xf32>
    %c0_21 = arith.constant 0 : index
    %c0_22 = arith.constant 0 : index
    %23 = vector.load %arg3[%c0_21, %c0_22] : memref<16x128xf32, #tpu.memory_space<vmem>>, vector<16x128xf32>
    %c0_23 = arith.constant 0 : index
    %c0_24 = arith.constant 0 : index
    %24 = vector.load %arg10[%c0_23, %c0_24] : memref<128x128xbf16, #tpu.memory_space<vmem>>, vector<128x128xbf16>
    %25 = arith.truncf %23 : vector<16x128xf32> to vector<16x128xbf16>
    %cst_25 = arith.constant dense<0.000000e+00> : vector<16x128xf32>
    %26 = tpu.matmul %25, %24, %cst_25 {dimension_numbers = #tpu.dot_dimension_numbers<[1], [0], [0], [1], [0, 0, 1, 1], [], []>} : vector<16x128xbf16>, vector<128x128xbf16>, vector<16x128xf32> -> vector<16x128xf32>
    %27 = arith.addf %22, %26 : vector<16x128xf32>
    %c0_26 = arith.constant 0 : index
    %c0_27 = arith.constant 0 : index
    %28 = vector.load %arg11[%c0_26, %c0_27] : memref<128x128xbf16, #tpu.memory_space<vmem>>, vector<128x128xbf16>
    %29 = arith.truncf %18 : vector<16x128xf32> to vector<16x128xbf16>
    %cst_28 = arith.constant dense<0.000000e+00> : vector<16x128xf32>
    %30 = tpu.matmul %29, %28, %cst_28 {dimension_numbers = #tpu.dot_dimension_numbers<[1], [0], [0], [1], [0, 0, 1, 1], [], []>} : vector<16x128xbf16>, vector<128x128xbf16>, vector<16x128xf32> -> vector<16x128xf32>
    %31 = arith.addf %27, %30 : vector<16x128xf32>
    %c0_29 = arith.constant 0 : index
    %c0_30 = arith.constant 0 : index
    %32 = vector.load %arg12[%c0_29, %c0_30] : memref<1x128xf32, #tpu.memory_space<vmem>>, vector<1x128xf32>
    %33 = vector.broadcast %32 : vector<1x128xf32> to vector<16x128xf32>
    %34 = arith.addf %31, %33 : vector<16x128xf32>
    %cst_31 = arith.constant 0.000000e+00 : f32
    %35 = vector.broadcast %cst_31 : f32 to vector<16x128xf32>
    %36 = arith.maximumf %34, %35 : vector<16x128xf32>
    %c0_32 = arith.constant 0 : index
    %c0_33 = arith.constant 0 : index
    %37 = vector.load %arg14[%c0_32, %c0_33] : memref<16x128xf32, #tpu.memory_space<vmem>>, vector<16x128xf32>
    tpu.vector_store %arg14[%c0_32, %c0_33], %36 {strides = array<i32>} : memref<16x128xf32, #tpu.memory_space<vmem>>, vector<16x128xf32>,
    return
  }
  func.func @transform_0(%arg0: i32) -> (i32, i32) {
    %c0_i32 = arith.constant 0 : i32
    %c0_i32_0 = arith.constant 0 : i32
    return %arg0, %c0_i32 : i32, i32
  }
  func.func @transform_1(%arg0: i32) -> (i32, i32) {
    %c0_i32 = arith.constant 0 : i32
    %c0_i32_0 = arith.constant 0 : i32
    return %arg0, %c0_i32 : i32, i32
  }
  func.func @transform_2(%arg0: i32) -> (i32, i32) {
    %c0_i32 = arith.constant 0 : i32
    %c0_i32_0 = arith.constant 0 : i32
    return %arg0, %c0_i32 : i32, i32
  }
  func.func @transform_3(%arg0: i32) -> (i32, i32) {
    %c0_i32 = arith.constant 0 : i32
    %c0_i32_0 = arith.constant 0 : i32
    return %arg0, %c0_i32 : i32, i32
  }
  func.func @transform_4(%arg0: i32) -> (i32, i32) {
    %c0_i32 = arith.constant 0 : i32
    %c0_i32_0 = arith.constant 0 : i32
    %c0_i32_1 = arith.constant 0 : i32
    return %c0_i32, %c0_i32_0 : i32, i32
  }
  func.func @transform_5(%arg0: i32) -> (i32, i32) {
    %c0_i32 = arith.constant 0 : i32
    %c0_i32_0 = arith.constant 0 : i32
    %c0_i32_1 = arith.constant 0 : i32
    return %c0_i32, %c0_i32_0 : i32, i32
  }
  func.func @transform_6(%arg0: i32) -> (i32, i32) {
    %c0_i32 = arith.constant 0 : i32
    %c0_i32_0 = arith.constant 0 : i32
    %c0_i32_1 = arith.constant 0 : i32
    return %c0_i32, %c0_i32_0 : i32, i32
  }
  func.func @transform_7(%arg0: i32) -> (i32, i32) {
    %c0_i32 = arith.constant 0 : i32
    %c0_i32_0 = arith.constant 0 : i32
    %c0_i32_1 = arith.constant 0 : i32
    return %c0_i32, %c0_i32_0 : i32, i32
  }
  func.func @transform_8(%arg0: i32) -> (i32, i32) {
    %c0_i32 = arith.constant 0 : i32
    %c0_i32_0 = arith.constant 0 : i32
    %c0_i32_1 = arith.constant 0 : i32
    return %c0_i32, %c0_i32_0 : i32, i32
  }
  func.func @transform_9(%arg0: i32) -> (i32, i32) {
    %c0_i32 = arith.constant 0 : i32
    %c0_i32_0 = arith.constant 0 : i32
    %c0_i32_1 = arith.constant 0 : i32
    return %c0_i32, %c0_i32_0 : i32, i32
  }
  func.func @transform_10(%arg0: i32) -> (i32, i32) {
    %c0_i32 = arith.constant 0 : i32
    %c0_i32_0 = arith.constant 0 : i32
    %c0_i32_1 = arith.constant 0 : i32
    return %c0_i32, %c0_i32_0 : i32, i32
  }
  func.func @transform_11(%arg0: i32) -> (i32, i32) {
    %c0_i32 = arith.constant 0 : i32
    %c0_i32_0 = arith.constant 0 : i32
    %c0_i32_1 = arith.constant 0 : i32
    return %c0_i32, %c0_i32_0 : i32, i32
  }
  func.func @transform_12(%arg0: i32) -> (i32, i32) {
    %c0_i32 = arith.constant 0 : i32
    %c0_i32_0 = arith.constant 0 : i32
    return %arg0, %c0_i32 : i32, i32
  }
  func.func @transform_13(%arg0: i32) -> (i32, i32) {
    %c0_i32 = arith.constant 0 : i32
    %c0_i32_0 = arith.constant 0 : i32
    return %arg0, %c0_i32 : i32, i32
  }
}

</mosaic_0001>

<llo_original>
// kernel: tpu_custom_call.1
$region0: #{tpu_custom_call.1}
  #allocation0 [shape = 'u32[]', space=smem, size = 0x4, offset = 0x4, fixed_abs, tag = 'smem constant byte address 0x4 - core index']
  #allocation1 [shape = 'u32[72,128]{1,0:T(1,128)}', space=vmem, size = 0x9000, scoped, tag = 'internal scratch']
  %s0 = inlined_call_operand.hbm [shape: f32[16,147], index: 0, kind: input, shape index: {}]
  %s1 = inlined_call_operand.hbm [shape: f32[16,128], index: 1, kind: input, shape index: {}]
  %s2 = inlined_call_operand.hbm [shape: f32[16,128], index: 2, kind: input, shape index: {}]
  %s3 = inlined_call_operand.hbm [shape: f32[16,16], index: 3, kind: input, shape index: {}]
  %s4 = inlined_call_operand.hbm [shape: bf16[147,128], index: 4, kind: input, shape index: {}]
  %s5 = inlined_call_operand.vmem [shape: f32[1,128], index: 5, kind: input, shape index: {}]
  %s6 = inlined_call_operand.hbm [shape: bf16[16,128], index: 6, kind: input, shape index: {}]
  %s7 = inlined_call_operand.vmem [shape: f32[1,128], index: 7, kind: input, shape index: {}]
  %s8 = inlined_call_operand.hbm [shape: bf16[128,128], index: 8, kind: input, shape index: {}]
  %s9 = inlined_call_operand.hbm [shape: bf16[128,128], index: 9, kind: input, shape index: {}]
  %s10 = inlined_call_operand.hbm [shape: bf16[128,128], index: 10, kind: input, shape index: {}]
  %s11 = inlined_call_operand.vmem [shape: f32[1,128], index: 11, kind: input, shape index: {}]
  %s12 = inlined_call_operand.hbm [shape: f32[16,128], index: 12, kind: output, shape index: {0}]
  %s13 = inlined_call_operand.hbm [shape: f32[16,128], index: 13, kind: output, shape index: {1}]
  %14 = xla_tuple %s12, %s13
  %s15 = sld [smem:[#allocation0]]
  $region102: #{tpu_custom_call.1} parent=0
    _
  %s17 = ssub.s32 1, %s15
  %s18 = scalar_select 0, %s17, %s15
  $region1: #{tpu_custom_call.1} parent=0
    #allocation2 [shape = 'u8[16384]{0}', space=vmem, size = 0x4000, scoped, tag = 'input window, operand 0, single buffered']
    #allocation3 [shape = 's32[1]{0}', space=sflag, size = 0x4, scoped, tag = 'scoped memory for tpu_custom_call.1']
    #allocation4 [shape = 's32[1]{0}', space=sflag, size = 0x4, scoped, tag = 'scoped memory for tpu_custom_call.1']
    #allocation5 [shape = 'u8[8192]{0}', space=vmem, size = 0x2000, scoped, tag = 'input window, operand 1, single buffered']
    #allocation6 [shape = 's32[1]{0}', space=sflag, size = 0x4, scoped, tag = 'scoped memory for tpu_custom_call.1']
    #allocation7 [shape = 'u8[8192]{0}', space=vmem, size = 0x2000, scoped, tag = 'input window, operand 2, single buffered']
    #allocation8 [shape = 'u8[8192]{0}', space=vmem, size = 0x2000, scoped, tag = 'input window, operand 3, single buffered']
    #allocation9 [shape = 's32[1]{0}', space=sflag, size = 0x4, scoped, tag = 'scoped memory for tpu_custom_call.1']
    #allocation10 [shape = 'u8[38912]{0}', space=vmem, size = 0x9800, scoped, tag = 'input window, operand 4, single buffered']
    #allocation11 [shape = 'u8[4096]{0}', space=vmem, size = 0x1000, scoped, tag = 'input window, operand 6, single buffered']
    #allocation12 [shape = 's32[1]{0}', space=sflag, size = 0x4, scoped, tag = 'scoped memory for tpu_custom_call.1']
    #allocation13 [shape = 'u8[32768]{0}', space=vmem, size = 0x8000, scoped, tag = 'input window, operand 8, single buffered']
    #allocation14 [shape = 'u8[32768]{0}', space=vmem, size = 0x8000, scoped, tag = 'input window, operand 9, single buffered']
    #allocation15 [shape = 's32[1]{0}', space=sflag, size = 0x4, scoped, tag = 'scoped memory for tpu_custom_call.1']
    #allocation16 [shape = 'u8[32768]{0}', space=vmem, size = 0x8000, scoped, tag = 'input window, operand 10, single buffered']
    #allocation17 [shape = 'u8[8192]{0}', space=vmem, size = 0x2000, scoped, tag = 'output window, operand 0, single buffered']
    #allocation18 [shape = 'u8[8192]{0}', space=vmem, size = 0x2000, scoped, tag = 'output window, operand 1, single buffered']
    #allocation19 [shape = 's32[1]{0}', space=sflag, size = 0x4, scoped, tag = 'scoped memory for tpu_custom_call.1']
    %19 = vsyncpa [#allocation3], 0
    %20 = vsyncpa [#allocation6], 0
    %21 = vsyncpa [#allocation9], 0
    %22 = vsyncpa [#allocation12], 0
    %23 = vsyncpa [#allocation15], 0
    %24 = vsyncpa [#allocation4], 0
    %25 = vsyncpa [#allocation19], 0
    // Predicated region
    $region2: #{tpu_custom_call.1} parent=1 // pred_check
      _
    $region3: #{tpu_custom_call.1} parent=1 // pred_check_branch
      %27 = sbr.rel (0) target = $region5
    $region4: #{tpu_custom_call.1} parent=1 // pred_region
      %29 = vsyncadd [#allocation3], 0
      %s30 = sshll.u32 %s0, 4
      %s31 = int_to_ptr.hbm [resolvable:$true] %s30
      %s32 = sshll.u32 [#allocation2], 4
      %s33 = int_to_ptr.vmem [resolvable:$true] %s32
      %38 = dma.hbm_to_vmem [thread:$0]  %s31, 512, %s33, [#allocation3], 256, 256, 16
    $region5: #{tpu_custom_call.1} parent=1 // pred_fallthru
      _
    // Predicated region
    $region6: #{tpu_custom_call.1} parent=1 // pred_check
      _
    $region7: #{tpu_custom_call.1} parent=1 // pred_check_branch
      %40 = sbr.rel (0) target = $region9
    $region8: #{tpu_custom_call.1} parent=1 // pred_region
      %42 = vsyncadd [#allocation6], 0
      %s43 = sshll.u32 %s1, 4
      %s44 = int_to_ptr.hbm [resolvable:$true] %s43
      %s45 = sshll.u32 [#allocation5], 4
      %s46 = int_to_ptr.vmem [resolvable:$true] %s45
      %51 = dma.hbm_to_vmem [thread:$0]  %s44, 256, %s46, [#allocation6], 128, 128, 8
    $region9: #{tpu_custom_call.1} parent=1 // pred_fallthru
      _
    // Predicated region
    $region10: #{tpu_custom_call.1} parent=1 // pred_check
      _
    $region11: #{tpu_custom_call.1} parent=1 // pred_check_branch
      %53 = sbr.rel (0) target = $region13
    $region12: #{tpu_custom_call.1} parent=1 // pred_region
      %55 = vsyncadd [#allocation6], 0
      %s56 = sshll.u32 %s2, 4
      %s57 = int_to_ptr.hbm [resolvable:$true] %s56
      %s58 = sshll.u32 [#allocation7], 4
      %s59 = int_to_ptr.vmem [resolvable:$true] %s58
      %64 = dma.hbm_to_vmem [thread:$0]  %s57, 256, %s59, [#allocation6], 128, 128, 8
    $region13: #{tpu_custom_call.1} parent=1 // pred_fallthru
      _
    // Predicated region
    $region14: #{tpu_custom_call.1} parent=1 // pred_check
      _
    $region15: #{tpu_custom_call.1} parent=1 // pred_check_branch
      %66 = sbr.rel (0) target = $region17
    $region16: #{tpu_custom_call.1} parent=1 // pred_region
      %68 = vsyncadd [#allocation9], 0
      %s69 = sshll.u32 %s3, 4
      %s70 = int_to_ptr.hbm [resolvable:$true] %s69
      %s71 = sshll.u32 [#allocation8], 4
      %s72 = int_to_ptr.vmem [resolvable:$true] %s71
      %77 = dma.hbm_to_vmem [thread:$0]  %s70, 256, %s72, [#allocation9], 128, 128, 8
    $region17: #{tpu_custom_call.1} parent=1 // pred_fallthru
      _
    // Predicated region
    $region18: #{tpu_custom_call.1} parent=1 // pred_check
      _
    $region19: #{tpu_custom_call.1} parent=1 // pred_check_branch
      %79 = sbr.rel (0) target = $region21
    $region20: #{tpu_custom_call.1} parent=1 // pred_region
      %81 = vsyncadd [#allocation9], 0
      %s82 = sshll.u32 %s4, 4
      %s83 = int_to_ptr.hbm [resolvable:$true] %s82
      %s84 = sshll.u32 [#allocation10], 4
      %s85 = int_to_ptr.vmem [resolvable:$true] %s84
      %90 = dma.hbm_to_vmem [thread:$0]  %s83, 1216, %s85, [#allocation9], 64, 64, 4
    $region21: #{tpu_custom_call.1} parent=1 // pred_fallthru
      _
    // Predicated region
    $region22: #{tpu_custom_call.1} parent=1 // pred_check
      _
    $region23: #{tpu_custom_call.1} parent=1 // pred_check_branch
      %92 = sbr.rel (0) target = $region25
    $region24: #{tpu_custom_call.1} parent=1 // pred_region
      _
    $region25: #{tpu_custom_call.1} parent=1 // pred_fallthru
      _
    // Predicated region
    $region26: #{tpu_custom_call.1} parent=1 // pred_check
      _
    $region27: #{tpu_custom_call.1} parent=1 // pred_check_branch
      %94 = sbr.rel (0) target = $region29
    $region28: #{tpu_custom_call.1} parent=1 // pred_region
      %96 = vsyncadd [#allocation12], 0
      %s97 = sshll.u32 %s6, 4
      %s98 = int_to_ptr.hbm [resolvable:$true] %s97
      %s99 = sshll.u32 [#allocation11], 4
      %s100 = int_to_ptr.vmem [resolvable:$true] %s99
      %105 = dma.hbm_to_vmem [thread:$0]  %s98, 128, %s100, [#allocation12], 64, 64, 4
    $region29: #{tpu_custom_call.1} parent=1 // pred_fallthru
      _
    // Predicated region
    $region30: #{tpu_custom_call.1} parent=1 // pred_check
      _
    $region31: #{tpu_custom_call.1} parent=1 // pred_check_branch
      %107 = sbr.rel (0) target = $region33
    $region32: #{tpu_custom_call.1} parent=1 // pred_region
      _
    $region33: #{tpu_custom_call.1} parent=1 // pred_fallthru
      _
    // Predicated region
    $region34: #{tpu_custom_call.1} parent=1 // pred_check
      _
    $region35: #{tpu_custom_call.1} parent=1 // pred_check_branch
      %109 = sbr.rel (0) target = $region37
    $region36: #{tpu_custom_call.1} parent=1 // pred_region
      %111 = vsyncadd [#allocation12], 0
      %s112 = sshll.u32 %s8, 4
      %s113 = int_to_ptr.hbm [resolvable:$true] %s112
      %s114 = sshll.u32 [#allocation13], 4
      %s115 = int_to_ptr.vmem [resolvable:$true] %s114
      %120 = dma.hbm_to_vmem [thread:$0]  %s113, 1024, %s115, [#allocation12], 64, 64, 4
    $region37: #{tpu_custom_call.1} parent=1 // pred_fallthru
      _
    // Predicated region
    $region38: #{tpu_custom_call.1} parent=1 // pred_check
      _
    $region39: #{tpu_custom_call.1} parent=1 // pred_check_branch
      %122 = sbr.rel (0) target = $region41
    $region40: #{tpu_custom_call.1} parent=1 // pred_region
      %124 = vsyncadd [#allocation15], 0
      %s125 = sshll.u32 %s9, 4
      %s126 = int_to_ptr.hbm [resolvable:$true] %s125
      %s127 = sshll.u32 [#allocation14], 4
      %s128 = int_to_ptr.vmem [resolvable:$true] %s127
      %133 = dma.hbm_to_vmem [thread:$0]  %s126, 1024, %s128, [#allocation15], 64, 64, 4
    $region41: #{tpu_custom_call.1} parent=1 // pred_fallthru
      _
    // Predicated region
    $region42: #{tpu_custom_call.1} parent=1 // pred_check
      _
    $region43: #{tpu_custom_call.1} parent=1 // pred_check_branch
      %135 = sbr.rel (0) target = $region45
    $region44: #{tpu_custom_call.1} parent=1 // pred_region
      %137 = vsyncadd [#allocation15], 0
      %s138 = sshll.u32 %s10, 4
      %s139 = int_to_ptr.hbm [resolvable:$true] %s138
      %s140 = sshll.u32 [#allocation16], 4
      %s141 = int_to_ptr.vmem [resolvable:$true] %s140
      %146 = dma.hbm_to_vmem [thread:$0]  %s139, 1024, %s141, [#allocation15], 64, 64, 4
    $region45: #{tpu_custom_call.1} parent=1 // pred_fallthru
      _
    // Predicated region
    $region46: #{tpu_custom_call.1} parent=1 // pred_check
      _
    $region47: #{tpu_custom_call.1} parent=1 // pred_check_branch
      %148 = sbr.rel (0) target = $region49
    $region48: #{tpu_custom_call.1} parent=1 // pred_region
      _
    $region49: #{tpu_custom_call.1} parent=1 // pred_fallthru
      _
    // Predicated region
    $region50: #{tpu_custom_call.1} parent=1 // pred_check
      _
    $region51: #{tpu_custom_call.1} parent=1 // pred_check_branch
      %150 = sbr.rel (0) target = $region53
    $region52: #{tpu_custom_call.1} parent=1 // pred_region
      %152 = dma.done [#allocation3], 512
    $region53: #{tpu_custom_call.1} parent=1 // pred_fallthru
      _
    // Predicated region
    $region54: #{tpu_custom_call.1} parent=1 // pred_check
      _
    $region55: #{tpu_custom_call.1} parent=1 // pred_check_branch
      %154 = sbr.rel (0) target = $region57
    $region56: #{tpu_custom_call.1} parent=1 // pred_region
      %156 = dma.done [#allocation6], 256
    $region57: #{tpu_custom_call.1} parent=1 // pred_fallthru
      _
    // Predicated region
    $region58: #{tpu_custom_call.1} parent=1 // pred_check
      _
    $region59: #{tpu_custom_call.1} parent=1 // pred_check_branch
      %158 = sbr.rel (0) target = $region61
    $region60: #{tpu_custom_call.1} parent=1 // pred_region
      %160 = dma.done [#allocation6], 256
    $region61: #{tpu_custom_call.1} parent=1 // pred_fallthru
      _
    // Predicated region
    $region62: #{tpu_custom_call.1} parent=1 // pred_check
      _
    $region63: #{tpu_custom_call.1} parent=1 // pred_check_branch
      %162 = sbr.rel (0) target = $region65
    $region64: #{tpu_custom_call.1} parent=1 // pred_region
      %164 = dma.done [#allocation9], 256
    $region65: #{tpu_custom_call.1} parent=1 // pred_fallthru
      _
    // Predicated region
    $region66: #{tpu_custom_call.1} parent=1 // pred_check
      _
    $region67: #{tpu_custom_call.1} parent=1 // pred_check_branch
      %166 = sbr.rel (0) target = $region69
    $region68: #{tpu_custom_call.1} parent=1 // pred_region
      %168 = dma.done [#allocation9], 1216
    $region69: #{tpu_custom_call.1} parent=1 // pred_fallthru
      _
    // Predicated region
    $region70: #{tpu_custom_call.1} parent=1 // pred_check
      _
    $region71: #{tpu_custom_call.1} parent=1 // pred_check_branch
      %170 = sbr.rel (0) target = $region73
    $region72: #{tpu_custom_call.1} parent=1 // pred_region
      %172 = dma.done [#allocation12], 128
    $region73: #{tpu_custom_call.1} parent=1 // pred_fallthru
      _
    // Predicated region
    $region74: #{tpu_custom_call.1} parent=1 // pred_check
      _
    $region75: #{tpu_custom_call.1} parent=1 // pred_check_branch
      %174 = sbr.rel (0) target = $region77
    $region76: #{tpu_custom_call.1} parent=1 // pred_region
      %176 = dma.done [#allocation12], 1024
    $region77: #{tpu_custom_call.1} parent=1 // pred_fallthru
      _
    // Predicated region
    $region78: #{tpu_custom_call.1} parent=1 // pred_check
      _
    $region79: #{tpu_custom_call.1} parent=1 // pred_check_branch
      %178 = sbr.rel (0) target = $region81
    $region80: #{tpu_custom_call.1} parent=1 // pred_region
      %180 = dma.done [#allocation15], 1024
    $region81: #{tpu_custom_call.1} parent=1 // pred_fallthru
      _
    // Predicated region
    $region82: #{tpu_custom_call.1} parent=1 // pred_check
      _
    $region83: #{tpu_custom_call.1} parent=1 // pred_check_branch
      %182 = sbr.rel (0) target = $region85
    $region84: #{tpu_custom_call.1} parent=1 // pred_region
      %184 = dma.done [#allocation15], 1024
    $region85: #{tpu_custom_call.1} parent=1 // pred_fallthru
      _
    %v186 = vld [vmem:[#allocation2] sm:$0xff]
    %v187 = vld [vmem:[#allocation2 + $0x8] sm:$0xff]
    %v188 = vld [vmem:[#allocation2 + $0x10] sm:$0xff]
    %v189 = vld [vmem:[#allocation2 + $0x18] sm:$0xff]
    %v190 = vld [vmem:[#allocation10] sm:$0xf]
    %v191 = vld [vmem:[#allocation10 + $0x4] sm:$0xf]
    %v192 = vld [vmem:[#allocation10 + $0x8] sm:$0xf]
    %v193 = vld [vmem:[#allocation10 + $0xc] sm:$0xf]
    %v194 = vld [vmem:[#allocation10 + $0x10] sm:$0xf]
    %v195 = vld [vmem:[#allocation10 + $0x14] sm:$0xf]
    %v196 = vld [vmem:[#allocation10 + $0x18] sm:$0xf]
    %v197 = vld [vmem:[#allocation10 + $0x1c] sm:$0xf]
    %v198 = vld [vmem:[#allocation10 + $0x20] sm:$0xf]
    %v199 = vld [vmem:[#allocation10 + $0x24] sm:$0xf]
    %v200 = vld [vmem:[#allocation10 + $0x28] sm:$0xf]
    %v201 = vld [vmem:[#allocation10 + $0x2c] sm:$0xf]
    %v202 = vld [vmem:[#allocation10 + $0x30] sm:$0xf]
    %v203 = vld [vmem:[#allocation10 + $0x34] sm:$0xf]
    %v204 = vld [vmem:[#allocation10 + $0x38] sm:$0xf]
    %v205 = vld [vmem:[#allocation10 + $0x3c] sm:$0xf]
    %v206 = vld [vmem:[#allocation10 + $0x40] sm:$0xf]
    %v207 = vld [vmem:[#allocation10 + $0x44] sm:$0xf]
    %v208 = vld [vmem:[#allocation10 + $0x48] sm:$0x3]
    %v209 = vpack.c.bf16 %v188, %v186
    %v210 = vpack.c.bf16 %v189, %v187
    %v211 = vld [vmem:[%s5] sm:$0x1]
    %v213 = vperm.slane %v211, 0
    %v234 = vunpack.c.l.b16 %v190
    %v235 = vunpack.c.l.b16 %v191
    %v236 = vunpack.c.l.b16 %v192
    %v237 = vunpack.c.l.b16 %v193
    %v238 = vunpack.c.l.b16 %v194
    %v239 = vunpack.c.l.b16 %v195
    %v240 = vunpack.c.l.b16 %v196
    %v241 = vunpack.c.l.b16 %v197
    %v242 = vunpack.c.l.b16 %v198
    %v243 = vunpack.c.l.b16 %v199
    %v244 = vunpack.c.l.b16 %v200
    %v245 = vunpack.c.l.b16 %v201
    %v246 = vunpack.c.l.b16 %v202
    %v247 = vunpack.c.l.b16 %v203
    %v248 = vunpack.c.l.b16 %v204
    %v249 = vunpack.c.l.b16 %v205
    %v250 = vunpack.c.l.b16 %v206
    %v251 = vunpack.c.l.b16 %v207
    %v252 = vunpack.c.l.b16 %v208
    %v253 = vpack.c.b16 %v235, %v234
    %v254 = vpack.c.b16 %v237, %v236
    %v255 = vpack.c.b16 %v239, %v238
    %v256 = vpack.c.b16 %v241, %v240
    %v257 = vpack.c.b16 %v243, %v242
    %v258 = vpack.c.b16 %v245, %v244
    %v259 = vpack.c.b16 %v247, %v246
    %v260 = vpack.c.b16 %v249, %v248
    %v261 = vpack.c.b16 %v251, %v250
    %v262 = vpack.c.b16 %v252, %v252
    %vm272 = vcmask 154624
    %v274 = vsel %vm272, %v210, 0
    %vm276 = vcmask 1040384
    %vm277 = vcmask 1041408
    %v278 = vsel %vm276, 4294967295, 65535
    %v279 = vsel %vm277, %v278, 0
    %v281 = vand.u32 %v262, %v279
    %283 = vmatpush.bf16.msra.mxu0 %v260
    %284 = vmatpush.bf16.msra.mxu0 %v259
    %285 = vmatpush.bf16.msra.mxu0 %v258
    %286 = vmatpush.bf16.msra.mxu0 %v257
    %287 = vmatpush.bf16.msra.mxu0 %v256
    %288 = vmatpush.bf16.msra.mxu0 %v255
    %289 = vmatpush.bf16.msra.mxu0 %v254
    %290 = vmatpush.bf16.msra.mxu0 %v253
    %291 = vmatmul.bf16.gmra.mxu0 %v209
    %v292 = vpop.f32.mrf.mxu0
    %v293 = vadd.f32 %v213, %v292
    %v294 = vpop.f32.mrf.mxu0
    %v295 = vadd.f32 %v213, %v294
    %296 = vdwg.mxu0
    %297 = vmatpush.bf16.msra.mxu0 0
    %298 = vmatpush.bf16.msra.mxu0 0
    %299 = vmatpush.bf16.msra.mxu0 0
    %300 = vmatpush.bf16.msra.mxu0 0
    %301 = vmatpush.bf16.msra.mxu0 0
    %302 = vmatpush.bf16.msra.mxu0 0
    %303 = vmatpush.bf16.msra.mxu0 %v281
    %304 = vmatpush.bf16.msra.mxu0 %v261
    %305 = vmatmul.bf16.gmra.mxu0 %v274
    %v306 = vpop.f32.mrf.mxu0
    %v307 = vadd.f32 %v293, %v306
    %v308 = vpop.f32.mrf.mxu0
    %v309 = vadd.f32 %v295, %v308
    %310 = vdwg.mxu0
    %v311 = vmax.f32 %v307, 0.0
    %v312 = vmax.f32 %v309, 0.0
    %313 = vst [vmem:[#allocation17] sm:$0xff] %v311
    %314 = vst [vmem:[#allocation17 + $0x8] sm:$0xff] %v312
    %v315 = vld [vmem:[#allocation8] sm:$0xff]
    %v316 = vld [vmem:[#allocation8 + $0x8] sm:$0xff]
    %v317 = vld [vmem:[#allocation11] sm:$0xf]
    %v318 = vld [vmem:[#allocation11 + $0x4] sm:$0xf]
    %v319 = vpack.c.bf16 %v316, %v315
    %v320 = vld [vmem:[%s7] sm:$0x1]
    %v322 = vperm.slane %v320, 0
    %v326 = vunpack.c.l.b16 %v317
    %v327 = vunpack.c.l.b16 %v318
    %v328 = vpack.c.b16 %v327, %v326
    %vm330 = vcmask 130048
    %v332 = vsel %vm330, %v319, 0
    %334 = vmatpush.bf16.msra.mxu0 0
    %335 = vmatpush.bf16.msra.mxu0 0
    %336 = vmatpush.bf16.msra.mxu0 0
    %337 = vmatpush.bf16.msra.mxu0 0
    %338 = vmatpush.bf16.msra.mxu0 0
    %339 = vmatpush.bf16.msra.mxu0 0
    %340 = vmatpush.bf16.msra.mxu0 0
    %341 = vmatpush.bf16.msra.mxu0 %v328
    %342 = vmatmul.bf16.gmra.mxu0 %v332
    %v343 = vpop.f32.mrf.mxu0
    %v344 = vadd.f32 %v322, %v343
    %v345 = vpop.f32.mrf.mxu0
    %v346 = vadd.f32 %v322, %v345
    %347 = vdwg.mxu0
    %v348 = vmax.f32 %v344, 0.0
    %v349 = vmax.f32 %v346, 0.0
    %v350 = vld [vmem:[#allocation5] sm:$0xff]
    %v351 = vld [vmem:[#allocation5 + $0x8] sm:$0xff]
    %v352 = vld [vmem:[#allocation13] sm:$0xf]
    %v353 = vld [vmem:[#allocation13 + $0x4] sm:$0xf]
    %v354 = vld [vmem:[#allocation13 + $0x8] sm:$0xf]
    %v355 = vld [vmem:[#allocation13 + $0xc] sm:$0xf]
    %v356 = vld [vmem:[#allocation13 + $0x10] sm:$0xf]
    %v357 = vld [vmem:[#allocation13 + $0x14] sm:$0xf]
    %v358 = vld [vmem:[#allocation13 + $0x18] sm:$0xf]
    %v359 = vld [vmem:[#allocation13 + $0x1c] sm:$0xf]
    %v360 = vld [vmem:[#allocation13 + $0x20] sm:$0xf]
    %v361 = vld [vmem:[#allocation13 + $0x24] sm:$0xf]
    %v362 = vld [vmem:[#allocation13 + $0x28] sm:$0xf]
    %v363 = vld [vmem:[#allocation13 + $0x2c] sm:$0xf]
    %v364 = vld [vmem:[#allocation13 + $0x30] sm:$0xf]
    %v365 = vld [vmem:[#allocation13 + $0x34] sm:$0xf]
    %v366 = vld [vmem:[#allocation13 + $0x38] sm:$0xf]
    %v367 = vld [vmem:[#allocation13 + $0x3c] sm:$0xf]
    %v368 = vpack.c.bf16 %v351, %v350
    %v369 = vld [vmem:[#allocation7] sm:$0xff]
    %v370 = vld [vmem:[#allocation7 + $0x8] sm:$0xff]
    %v371 = vld [vmem:[#allocation14] sm:$0xf]
    %v372 = vld [vmem:[#allocation14 + $0x4] sm:$0xf]
    %v373 = vld [vmem:[#allocation14 + $0x8] sm:$0xf]
    %v374 = vld [vmem:[#allocation14 + $0xc] sm:$0xf]
    %v375 = vld [vmem:[#allocation14 + $0x10] sm:$0xf]
    %v376 = vld [vmem:[#allocation14 + $0x14] sm:$0xf]
    %v377 = vld [vmem:[#allocation14 + $0x18] sm:$0xf]
    %v378 = vld [vmem:[#allocation14 + $0x1c] sm:$0xf]
    %v379 = vld [vmem:[#allocation14 + $0x20] sm:$0xf]
    %v380 = vld [vmem:[#allocation14 + $0x24] sm:$0xf]
    %v381 = vld [vmem:[#allocation14 + $0x28] sm:$0xf]
    %v382 = vld [vmem:[#allocation14 + $0x2c] sm:$0xf]
    %v383 = vld [vmem:[#allocation14 + $0x30] sm:$0xf]
    %v384 = vld [vmem:[#allocation14 + $0x34] sm:$0xf]
    %v385 = vld [vmem:[#allocation14 + $0x38] sm:$0xf]
    %v386 = vld [vmem:[#allocation14 + $0x3c] sm:$0xf]
    %v387 = vpack.c.bf16 %v370, %v369
    %v404 = vunpack.c.l.b16 %v371
    %v405 = vunpack.c.l.b16 %v372
    %v406 = vunpack.c.l.b16 %v373
    %v407 = vunpack.c.l.b16 %v374
    %v408 = vunpack.c.l.b16 %v375
    %v409 = vunpack.c.l.b16 %v376
    %v410 = vunpack.c.l.b16 %v377
    %v411 = vunpack.c.l.b16 %v378
    %v412 = vunpack.c.l.b16 %v379
    %v413 = vunpack.c.l.b16 %v380
    %v414 = vunpack.c.l.b16 %v381
    %v415 = vunpack.c.l.b16 %v382
    %v416 = vunpack.c.l.b16 %v383
    %v417 = vunpack.c.l.b16 %v384
    %v418 = vunpack.c.l.b16 %v385
    %v419 = vunpack.c.l.b16 %v386
    %v420 = vpack.c.b16 %v405, %v404
    %v421 = vpack.c.b16 %v407, %v406
    %v422 = vpack.c.b16 %v409, %v408
    %v423 = vpack.c.b16 %v411, %v410
    %v424 = vpack.c.b16 %v413, %v412
    %v425 = vpack.c.b16 %v415, %v414
    %v426 = vpack.c.b16 %v417, %v416
    %v427 = vpack.c.b16 %v419, %v418
    %436 = vmatpush.bf16.msra.mxu0 %v427
    %437 = vmatpush.bf16.msra.mxu0 %v426
    %438 = vmatpush.bf16.msra.mxu0 %v425
    %439 = vmatpush.bf16.msra.mxu0 %v424
    %440 = vmatpush.bf16.msra.mxu0 %v423
    %441 = vmatpush.bf16.msra.mxu0 %v422
    %442 = vmatpush.bf16.msra.mxu0 %v421
    %443 = vmatpush.bf16.msra.mxu0 %v420
    %444 = vmatmul.bf16.gmra.mxu0 %v387
    %v445 = vpop.f32.mrf.mxu0
    %v446 = vadd.f32 0.0, %v445
    %v447 = vpop.f32.mrf.mxu0
    %v448 = vadd.f32 0.0, %v447
    %449 = vdwg.mxu0
    %v466 = vunpack.c.l.b16 %v352
    %v467 = vunpack.c.l.b16 %v353
    %v468 = vunpack.c.l.b16 %v354
    %v469 = vunpack.c.l.b16 %v355
    %v470 = vunpack.c.l.b16 %v356
    %v471 = vunpack.c.l.b16 %v357
    %v472 = vunpack.c.l.b16 %v358
    %v473 = vunpack.c.l.b16 %v359
    %v474 = vunpack.c.l.b16 %v360
    %v475 = vunpack.c.l.b16 %v361
    %v476 = vunpack.c.l.b16 %v362
    %v477 = vunpack.c.l.b16 %v363
    %v478 = vunpack.c.l.b16 %v364
    %v479 = vunpack.c.l.b16 %v365
    %v480 = vunpack.c.l.b16 %v366
    %v481 = vunpack.c.l.b16 %v367
    %v482 = vpack.c.b16 %v467, %v466
    %v483 = vpack.c.b16 %v469, %v468
    %v484 = vpack.c.b16 %v471, %v470
    %v485 = vpack.c.b16 %v473, %v472
    %v486 = vpack.c.b16 %v475, %v474
    %v487 = vpack.c.b16 %v477, %v476
    %v488 = vpack.c.b16 %v479, %v478
    %v489 = vpack.c.b16 %v481, %v480
    %498 = vmatpush.bf16.msra.mxu0 %v489
    %499 = vmatpush.bf16.msra.mxu0 %v488
    %500 = vmatpush.bf16.msra.mxu0 %v487
    %501 = vmatpush.bf16.msra.mxu0 %v486
    %502 = vmatpush.bf16.msra.mxu0 %v485
    %503 = vmatpush.bf16.msra.mxu0 %v484
    %504 = vmatpush.bf16.msra.mxu0 %v483
    %505 = vmatpush.bf16.msra.mxu0 %v482
    %506 = vmatmul.bf16.gmra.mxu0 %v368
    %v507 = vpop.f32.mrf.mxu0
    %v508 = vadd.f32 %v446, %v507
    %v509 = vpop.f32.mrf.mxu0
    %v510 = vadd.f32 %v448, %v509
    %511 = vdwg.mxu0
    %v512 = vld [vmem:[#allocation16] sm:$0xf]
    %v513 = vld [vmem:[#allocation16 + $0x4] sm:$0xf]
    %v514 = vld [vmem:[#allocation16 + $0x8] sm:$0xf]
    %v515 = vld [vmem:[#allocation16 + $0xc] sm:$0xf]
    %v516 = vld [vmem:[#allocation16 + $0x10] sm:$0xf]
    %v517 = vld [vmem:[#allocation16 + $0x14] sm:$0xf]
    %v518 = vld [vmem:[#allocation16 + $0x18] sm:$0xf]
    %v519 = vld [vmem:[#allocation16 + $0x1c] sm:$0xf]
    %v520 = vld [vmem:[#allocation16 + $0x20] sm:$0xf]
    %v521 = vld [vmem:[#allocation16 + $0x24] sm:$0xf]
    %v522 = vld [vmem:[#allocation16 + $0x28] sm:$0xf]
    %v523 = vld [vmem:[#allocation16 + $0x2c] sm:$0xf]
    %v524 = vld [vmem:[#allocation16 + $0x30] sm:$0xf]
    %v525 = vld [vmem:[#allocation16 + $0x34] sm:$0xf]
    %v526 = vld [vmem:[#allocation16 + $0x38] sm:$0xf]
    %v527 = vld [vmem:[#allocation16 + $0x3c] sm:$0xf]
    %v528 = vpack.c.bf16 %v349, %v348
    %v545 = vunpack.c.l.b16 %v512
    %v546 = vunpack.c.l.b16 %v513
    %v547 = vunpack.c.l.b16 %v514
    %v548 = vunpack.c.l.b16 %v515
    %v549 = vunpack.c.l.b16 %v516
    %v550 = vunpack.c.l.b16 %v517
    %v551 = vunpack.c.l.b16 %v518
    %v552 = vunpack.c.l.b16 %v519
    %v553 = vunpack.c.l.b16 %v520
    %v554 = vunpack.c.l.b16 %v521
    %v555 = vunpack.c.l.b16 %v522
    %v556 = vunpack.c.l.b16 %v523
    %v557 = vunpack.c.l.b16 %v524
    %v558 = vunpack.c.l.b16 %v525
    %v559 = vunpack.c.l.b16 %v526
    %v560 = vunpack.c.l.b16 %v527
    %v561 = vpack.c.b16 %v546, %v545
    %v562 = vpack.c.b16 %v548, %v547
    %v563 = vpack.c.b16 %v550, %v549
    %v564 = vpack.c.b16 %v552, %v551
    %v565 = vpack.c.b16 %v554, %v553
    %v566 = vpack.c.b16 %v556, %v555
    %v567 = vpack.c.b16 %v558, %v557
    %v568 = vpack.c.b16 %v560, %v559
    %577 = vmatpush.bf16.msra.mxu0 %v568
    %578 = vmatpush.bf16.msra.mxu0 %v567
    %579 = vmatpush.bf16.msra.mxu0 %v566
    %580 = vmatpush.bf16.msra.mxu0 %v565
    %581 = vmatpush.bf16.msra.mxu0 %v564
    %582 = vmatpush.bf16.msra.mxu0 %v563
    %583 = vmatpush.bf16.msra.mxu0 %v562
    %584 = vmatpush.bf16.msra.mxu0 %v561
    %585 = vmatmul.bf16.gmra.mxu0 %v528
    %v586 = vpop.f32.mrf.mxu0
    %v587 = vadd.f32 0.0, %v586
    %v588 = vpop.f32.mrf.mxu0
    %v589 = vadd.f32 0.0, %v588
    %590 = vdwg.mxu0
    %v591 = vadd.f32 %v508, %v587
    %v592 = vadd.f32 %v510, %v589
    %v593 = vld [vmem:[%s11] sm:$0x1]
    %v595 = vperm.slane %v593, 0
    %v597 = vadd.f32 %v591, %v595
    %v598 = vadd.f32 %v592, %v595
    %v599 = vmax.f32 %v597, 0.0
    %v600 = vmax.f32 %v598, 0.0
    %601 = vst [vmem:[#allocation18] sm:$0xff] %v599
    %602 = vst [vmem:[#allocation18 + $0x8] sm:$0xff] %v600
    // Predicated region
    $region86: #{tpu_custom_call.1} parent=1 // pred_check
      _
    $region87: #{tpu_custom_call.1} parent=1 // pred_check_branch
      %604 = sbr.rel (0) target = $region89
    $region88: #{tpu_custom_call.1} parent=1 // pred_region
      %606 = vsyncadd [#allocation4], 0
      %s607 = sshll.u32 [#allocation17], 4
      %s608 = int_to_ptr.vmem [resolvable:$true] %s607
      %s609 = sshll.u32 %s12, 4
      %s610 = int_to_ptr.hbm [resolvable:$true] %s609
      %615 = dma.vmem_to_hbm [thread:$0]  %s608, 256, %s610, [#allocation4], 128, 128, 8
    $region89: #{tpu_custom_call.1} parent=1 // pred_fallthru
      _
    // Predicated region
    $region90: #{tpu_custom_call.1} parent=1 // pred_check
      _
    $region91: #{tpu_custom_call.1} parent=1 // pred_check_branch
      %617 = sbr.rel (0) target = $region93
    $region92: #{tpu_custom_call.1} parent=1 // pred_region
      %619 = vsyncadd [#allocation19], 0
      %s620 = sshll.u32 [#allocation18], 4
      %s621 = int_to_ptr.vmem [resolvable:$true] %s620
      %s622 = sshll.u32 %s13, 4
      %s623 = int_to_ptr.hbm [resolvable:$true] %s622
      %628 = dma.vmem_to_hbm [thread:$0]  %s621, 256, %s623, [#allocation19], 128, 128, 8
    $region93: #{tpu_custom_call.1} parent=1 // pred_fallthru
      _
    // Predicated region
    $region94: #{tpu_custom_call.1} parent=1 // pred_check
      _
    $region95: #{tpu_custom_call.1} parent=1 // pred_check_branch
      %630 = sbr.rel (0) target = $region97
    $region96: #{tpu_custom_call.1} parent=1 // pred_region
      %632 = dma.done [#allocation4], 256
    $region97: #{tpu_custom_call.1} parent=1 // pred_fallthru
      _
    // Predicated region
    $region98: #{tpu_custom_call.1} parent=1 // pred_check
      _
    $region99: #{tpu_custom_call.1} parent=1 // pred_check_branch
      %634 = sbr.rel (0) target = $region101
    $region100: #{tpu_custom_call.1} parent=1 // pred_region
      %636 = dma.done [#allocation19], 256
    $region101: #{tpu_custom_call.1} parent=1 // pred_fallthru
      _
    %637 = vsyncpa [#allocation3], 1
    %638 = vsyncpa [#allocation6], 1
    %639 = vsyncpa [#allocation9], 1
    %640 = vsyncpa [#allocation12], 1
    %641 = vsyncpa [#allocation15], 1
    %642 = vsyncpa [#allocation4], 1
    %643 = vsyncpa [#allocation19], 1

</llo_original>
